<compile_context>
chip_gen: v5e
topology: v5e:2x2
jax: 0.10.0
libtpu: 0.0.40
codegen_flags: <defaults>
</compile_context>

<pallas_src>
import math
import functools

import jax
import jax.numpy as jnp
from jax.experimental import pallas as pl
from jax.experimental.pallas import tpu as pltpu

ALPHA = 2.0
PI_CONST = 3.141592654               # exact constant used by the PyTorch reference
LOG_SQRT_2PI = 0.5 * math.log(2.0 * PI_CONST)

TN = 128                             # lane width
BM_MAX = 2048                        # sublane rows per block: 2048x128 f32 = 1 MiB per stream
VMEM_LIMIT_BYTES = 32 * 1024 * 1024  # explicit scoped-VMEM budget (safe on v5e/v6e/v7x)


def _round_up(x, m):
    return (x + m - 1) // m * m


def _sublane_mult(dtype):
    # native tile sublane count: f32 -> 8, bf16/f16 -> 16, int8/fp8 -> 32
    return max(8, 32 // jnp.dtype(dtype).itemsize)


def _nll_f32_refs(p_ref, t_ref, ls_ref):
    """Elementwise negative log-likelihood in f32, reading native-dtype refs."""
    p = p_ref[...].astype(jnp.float32)
    t = t_ref[...].astype(jnp.float32)
    ls = ls_ref[...].astype(jnp.float32)
    z = ALPHA * (p - t) * jnp.exp(-ls)
    return 0.5 * z * z + ls + LOG_SQRT_2PI


def _nll_f32_jax(p, t, ls):
    """Same math for the tiny (<=127 element) tail, in plain JAX."""
    p = p.astype(jnp.float32)
    t = t.astype(jnp.float32)
    ls = ls.astype(jnp.float32)
    z = ALPHA * (p - t) * jnp.exp(-ls)
    return 0.5 * z * z + ls + LOG_SQRT_2PI


def _make_sum_kernel(rows, bm, nblocks, has_weight):
    """Per-block (8,128) f32 partial of sum(nll [* w*w]); mask only on the partial last block."""
    needs_mask = (rows % bm) != 0      # static: only the final block can be partially valid

    def kernel(*refs):
        if has_weight:
            p_ref, t_ref, ls_ref, w_ref, out_ref = refs
        else:
            p_ref, t_ref, ls_ref, out_ref = refs
            w_ref = None

        nll = _nll_f32_refs(p_ref, t_ref, ls_ref)
        if has_weight:
            w = w_ref[...].astype(jnp.float32)
            nll = nll * w * w          # intentional double weight application (matches reference)

        def partial_of(x):
            # VPU-only reduce of bm//8 vregs into one (8,128) lane-dense partial.
            return x.reshape(bm // 8, 8, TN).sum(axis=0)

        if needs_mask:
            blk = pl.program_id(0)
            is_tail = blk == (nblocks - 1)

            @pl.when(jnp.logical_not(is_tail))
            def _():
                out_ref[0] = partial_of(nll)

            @pl.when(is_tail)
            def _():
                row_idx = jax.lax.broadcasted_iota(jnp.int32, (bm, TN), 0) + blk * bm
                out_ref[0] = partial_of(jnp.where(row_idx < rows, nll, 0.0))
        else:
            out_ref[0] = partial_of(nll)

    return kernel


def _make_elem_kernel(loss_weight, has_weight):
    """Per-element loss (reduction='none'); weight and loss_weight fused in."""
    def kernel(*refs):
        if has_weight:
            p_ref, t_ref, ls_ref, w_ref, out_ref = refs
        else:
            p_ref, t_ref, ls_ref, out_ref = refs
            w_ref = None
        nll = _nll_f32_refs(p_ref, t_ref, ls_ref)
        if has_weight:
            w = w_ref[...].astype(jnp.float32)
            nll = nll * w * w          # intentional double weight application (matches reference)
        out_ref[...] = (loss_weight * nll).astype(out_ref.dtype)
    return kernel


@functools.partial(jax.jit, static_argnames=("reduction", "loss_weight"))
def gaussian_loss_pallas(pred, target, logstd, weight=None, avg_factor=None,
                         reduction="mean", loss_weight=1.0):
    assert pred.shape == target.shape == logstd.shape
    orig_shape = pred.shape
    n = int(pred.size)

    flats = [pred.reshape(-1), target.reshape(-1), logstd.reshape(-1)]
    has_weight = weight is not None
    if has_weight:
        assert int(weight.size) == n
        flats.append(weight.reshape(-1))

    # 128-aligned prefix goes through the kernel; the <=127-element tail is done in plain JAX.
    rows = n // TN
    n_head = rows * TN
    n_tail = n - n_head

    def tail_nll():
        tp, tt, tl = (x[n_head:] for x in flats[:3])
        t_nll = _nll_f32_jax(tp, tt, tl)
        if has_weight:
            tw = flats[3][n_head:].astype(jnp.float32)
            t_nll = t_nll * tw * tw
        return t_nll

    def head_inputs():
        # Aligned case: reshape of a contiguous flat array is free (no HBM copy).
        if n_tail:
            return [x[:n_head].reshape(rows, TN) for x in flats]
        return [x.reshape(rows, TN) for x in flats]

    if reduction == "none":
        out_dtype = jnp.result_type(*(x.dtype for x in flats))
        if rows == 0:
            return (float(loss_weight) * tail_nll()).astype(out_dtype).reshape(orig_shape)

        heads = head_inputs()
        sub = max(_sublane_mult(x.dtype) for x in heads)
        bm = min(BM_MAX, _round_up(rows, sub))
        nblocks = pl.cdiv(rows, bm)
        tile = pl.BlockSpec((bm, TN), lambda b: (b, 0))
        in_bytes = sum(n_head * jnp.dtype(x.dtype).itemsize for x in heads)
        out_bytes = n_head * jnp.dtype(out_dtype).itemsize

        head_out = pl.pallas_call(
            _make_elem_kernel(float(loss_weight), has_weight),
            out_shape=jax.ShapeDtypeStruct((rows, TN), out_dtype),
            grid_spec=pltpu.PrefetchScalarGridSpec(
                num_scalar_prefetch=0,
                grid=(nblocks,),
                in_specs=[tile] * len(heads),
                out_specs=tile,
            ),
            compiler_params=pltpu.CompilerParams(
                dimension_semantics=("parallel",),
                vmem_limit_bytes=VMEM_LIMIT_BYTES),
            cost_estimate=pl.CostEstimate(
                flops=12 * n_head, transcendentals=n_head,
                bytes_accessed=in_bytes + out_bytes),
        )(*heads)

        head_flat = head_out.reshape(-1)
        if n_tail:
            tail = (float(loss_weight) * tail_nll()).astype(out_dtype)
            head_flat = jnp.concatenate([head_flat, tail])
        return head_flat.reshape(orig_shape)

    # ---- 'mean' / 'sum' path ----
    if rows == 0:
        total_nll = jnp.sum(tail_nll())
    else:
        heads = head_inputs()
        sub = max(_sublane_mult(x.dtype) for x in heads)
        bm = min(BM_MAX, _round_up(rows, sub))
        nblocks = pl.cdiv(rows, bm)
        in_bytes = sum(n_head * jnp.dtype(x.dtype).itemsize for x in heads)
        out_bytes = nblocks * 8 * TN * 4

        partials = pl.pallas_call(
            _make_sum_kernel(rows, bm, nblocks, has_weight),
            out_shape=jax.ShapeDtypeStruct((nblocks, 8, TN), jnp.float32),
            grid_spec=pltpu.PrefetchScalarGridSpec(
                num_scalar_prefetch=0,
                grid=(nblocks,),
                in_specs=[pl.BlockSpec((bm, TN), lambda b: (b, 0))] * len(heads),
                out_specs=pl.BlockSpec((1, 8, TN), lambda b: (b, 0, 0)),
            ),
            compiler_params=pltpu.CompilerParams(
                dimension_semantics=("parallel",),
                vmem_limit_bytes=VMEM_LIMIT_BYTES),
            cost_estimate=pl.CostEstimate(
                flops=12 * n_head, transcendentals=n_head,
                bytes_accessed=in_bytes + out_bytes),
        )(*heads)

        total_nll = jnp.sum(partials)          # tiny final reduce in JAX
        if n_tail:
            total_nll = total_nll + jnp.sum(tail_nll())

    if avg_factor is not None:
        if reduction != "mean":
            raise ValueError("avg_factor is only supported with reduction='mean'")
        reduced = total_nll / avg_factor
    else:
        reduced = total_nll / n if reduction == "mean" else total_nll
    return loss_weight * reduced


class GaussianLossPallas:
    """Drop-in equivalent of the PyTorch GaussianLoss module (forward only)."""

    def __init__(self, reduction="mean", loss_weight=1.0):
        assert reduction in ("none", "sum", "mean")
        self.reduction = reduction
        self.loss_weight = float(loss_weight)

    def __call__(self, pred, target, logstd, weight=None, avg_factor=None,
                 reduction_override=None):
        assert reduction_override in (None, "none", "mean", "sum")
        reduction = reduction_override if reduction_override else self.reduction
        return gaussian_loss_pallas(pred, target, logstd, weight=weight,
                                    avg_factor=avg_factor, reduction=reduction,
                                    loss_weight=self.loss_weight)


# ---------------------------- reference (pure JAX, mirrors torch code) ----------------------------
def _reference(pred, target, logstd, weight=None, avg_factor=None,
               reduction="mean", loss_weight=1.0):
    p = pred.astype(jnp.float32)
    t = target.astype(jnp.float32)
    sigma = jnp.exp(logstd.astype(jnp.float32))
    g = jnp.exp(-0.5 * (ALPHA * (p - t) / sigma) ** 2) / (sigma * (2 * PI_CONST) ** 0.5)
    likelihood = jnp.log(g)
    if weight is not None:
        w = weight.astype(jnp.float32)
        likelihood = likelihood * w        # first application (gaussian_loss)
        likelihood = likelihood * w        # second application (weight_reduce_loss)
    if avg_factor is None:
        if reduction == "mean":
            red = jnp.mean(likelihood)
        elif reduction == "sum":
            red = jnp.sum(likelihood)
        else:
            red = likelihood
    else:
        assert reduction == "mean"
        red = jnp.sum(likelihood) / avg_factor
    return loss_weight * (-red)


if __name__ == "__main__":
    key = jax.random.PRNGKey(0)
    k1, k2, k3, k4 = jax.random.split(key, 4)

    # --- main small test: (2, 4, 16, 16), divides evenly into 128-lane rows ---
    shape = (2, 4, 16, 16)
    pred = jax.random.normal(k1, shape, dtype=jnp.float32)
    target = pred + 0.3 * jax.random.normal(k2, shape, dtype=jnp.float32)
    logstd = 0.1 * jax.random.normal(k3, shape, dtype=jnp.float32)
    weight = jax.random.uniform(k4, shape, dtype=jnp.float32)

    loss_mod = GaussianLossPallas(reduction="mean", loss_weight=1.0)

    loss = loss_mod(pred, target, logstd)
    jax.block_until_ready(loss)
    ref = _reference(pred, target, logstd, reduction="mean")
    assert jnp.allclose(loss, ref, rtol=1e-5, atol=1e-5), (loss, ref)

    loss_sum = loss_mod(pred, target, logstd, reduction_override="sum")
    ref_sum = _reference(pred, target, logstd, reduction="sum")
    assert jnp.allclose(loss_sum, ref_sum, rtol=1e-4, atol=1e-4), (loss_sum, ref_sum)

    loss_none = loss_mod(pred, target, logstd, reduction_override="none")
    ref_none = _reference(pred, target, logstd, reduction="none")
    assert jnp.allclose(loss_none, ref_none, rtol=1e-5, atol=1e-5)

    loss_w = loss_mod(pred, target, logstd, weight=weight)
    ref_w = _reference(pred, target, logstd, weight=weight, reduction="mean")
    assert jnp.allclose(loss_w, ref_w, rtol=1e-5, atol=1e-5), (loss_w, ref_w)

    loss_af = loss_mod(pred, target, logstd, weight=weight, avg_factor=123.0)
    ref_af = _reference(pred, target, logstd, weight=weight, avg_factor=123.0,
                        reduction="mean")
    assert jnp.allclose(loss_af, ref_af, rtol=1e-5, atol=1e-5), (loss_af, ref_af)

    # --- misaligned tail test: n not a multiple of 128 (tail handled in plain JAX, no pad) ---
    shape2 = (2, 487)     # n = 974 -> 7 aligned rows + 78-element tail
    ka, kb, kc = jax.random.split(jax.random.PRNGKey(1), 3)
    p2 = jax.random.normal(ka, shape2, dtype=jnp.float32)
    t2 = p2 + 0.3 * jax.random.normal(kb, shape2, dtype=jnp.float32)
    l2 = 0.1 * jax.random.normal(kc, shape2, dtype=jnp.float32)
    out2 = loss_mod(p2, t2, l2)
    ref2 = _reference(p2, t2, l2, reduction="mean")
    assert jnp.allclose(out2, ref2, rtol=1e-5, atol=1e-5), (out2, ref2)
    out2n = loss_mod(p2, t2, l2, reduction_override="none")
    ref2n = _reference(p2, t2, l2, reduction="none")
    assert jnp.allclose(out2n, ref2n, rtol=1e-5, atol=1e-5)

    # --- multi-block / parallel-grid / partial-last-block test ---
    shape3 = (3, 100000)  # n = 300000 -> rows = 2343 -> 2 blocks of 2048x128 + 96-element tail
    kd, ke, kf = jax.random.split(jax.random.PRNGKey(2), 3)
    p3 = jax.random.normal(kd, shape3, dtype=jnp.float32)
    t3 = p3 + 0.3 * jax.random.normal(ke, shape3, dtype=jnp.float32)
    l3 = 0.1 * jax.random.normal(kf, shape3, dtype=jnp.float32)
    out3 = loss_mod(p3, t3, l3)
    ref3 = _reference(p3, t3, l3, reduction="mean")
    assert jnp.allclose(out3, ref3, rtol=5e-5, atol=1e-5), (out3, ref3)
    out3s = loss_mod(p3, t3, l3, reduction_override="sum")
    ref3s = _reference(p3, t3, l3, reduction="sum")
    assert jnp.allclose(out3s, ref3s, rtol=5e-5, atol=1e-2), (out3s, ref3s)
    out3n = loss_mod(p3, t3, l3, reduction_override="none")
    ref3n = _reference(p3, t3, l3, reduction="none")
    assert jnp.allclose(out3n, ref3n, rtol=1e-5, atol=1e-5)

    jax.block_until_ready(out3s)
    print("KERNEL_OK")
</pallas_src>

<mosaic_0001>
module attributes {stable_mosaic.version = 11 : i64} {
  func.func @kernel(%arg0: i32, %arg1: memref<16x128xf32, #tpu.memory_space<vmem>>, %arg2: memref<16x128xf32, #tpu.memory_space<vmem>>, %arg3: memref<16x128xf32, #tpu.memory_space<vmem>>, %arg4: memref<1x8x128xf32, #tpu.memory_space<vmem>>) attributes {dimension_semantics = [#tpu.dimension_semantics<parallel>], iteration_bounds = array<i64: 1>, scalar_prefetch = 0 : i64, scratch_operands = 0 : i64, tpu.core_type = #tpu.core_type<tc>, window_params = [{transform_indices = @transform_0, window_bounds = array<i64: 16, 128>}, {transform_indices = @transform_1, window_bounds = array<i64: 16, 128>}, {transform_indices = @transform_2, window_bounds = array<i64: 16, 128>}, {transform_indices = @transform_3, window_bounds = array<i64: 1, 8, 128>}]} {
    %c0 = arith.constant 0 : index
    %c0_0 = arith.constant 0 : index
    %0 = vector.load %arg1[%c0, %c0_0] : memref<16x128xf32, #tpu.memory_space<vmem>>, vector<16x128xf32>
    %c0_1 = arith.constant 0 : index
    %c0_2 = arith.constant 0 : index
    %1 = vector.load %arg2[%c0_1, %c0_2] : memref<16x128xf32, #tpu.memory_space<vmem>>, vector<16x128xf32>
    %c0_3 = arith.constant 0 : index
    %c0_4 = arith.constant 0 : index
    %2 = vector.load %arg3[%c0_3, %c0_4] : memref<16x128xf32, #tpu.memory_space<vmem>>, vector<16x128xf32>
    %3 = arith.subf %0, %1 : vector<16x128xf32>
    %cst = arith.constant 2.000000e+00 : f32
    %4 = vector.broadcast %cst : f32 to vector<16x128xf32>
    %5 = arith.mulf %4, %3 : vector<16x128xf32>
    %cst_5 = arith.constant 0.000000e+00 : f32
    %6 = vector.broadcast %cst_5 : f32 to vector<16x128xf32>
    %7 = arith.subf %6, %2 : vector<16x128xf32>
    %8 = math.exp %7 : vector<16x128xf32>
    %9 = arith.mulf %5, %8 : vector<16x128xf32>
    %cst_6 = arith.constant 5.000000e-01 : f32
    %10 = vector.broadcast %cst_6 : f32 to vector<16x128xf32>
    %11 = arith.mulf %10, %9 : vector<16x128xf32>
    %12 = arith.mulf %11, %9 : vector<16x128xf32>
    %13 = arith.addf %12, %2 : vector<16x128xf32>
    %cst_7 = arith.constant 0.918938517 : f32
    %14 = vector.broadcast %cst_7 : f32 to vector<16x128xf32>
    %15 = arith.addf %13, %14 : vector<16x128xf32>
    %16 = vector.shape_cast %15 : vector<16x128xf32> to vector<2x8x128xf32>
    %cst_8 = arith.constant dense<0.000000e+00> : vector<8x128xf32>
    %17 = vector.multi_reduction <add>, %16, %cst_8 [0] : vector<2x8x128xf32> to vector<8x128xf32>
    %c0_9 = arith.constant 0 : index
    %c0_10 = arith.constant 0 : index
    %c0_11 = arith.constant 0 : index
    %18 = vector.load %arg4[%c0_9, %c0_10, %c0_11] : memref<1x8x128xf32, #tpu.memory_space<vmem>>, vector<1x8x128xf32>
    %19 = vector.shape_cast %18 : vector<1x8x128xf32> to vector<8x128xf32>
    %20 = vector.shape_cast %17 : vector<8x128xf32> to vector<1x8x128xf32>
    tpu.vector_store %arg4[%c0_9, %c0_10, %c0_11], %20 {strides = array<i32>} : memref<1x8x128xf32, #tpu.memory_space<vmem>>, vector<1x8x128xf32>,
    return
  }
  func.func @transform_0(%arg0: i32) -> (i32, i32) {
    %c0_i32 = arith.constant 0 : i32
    %c0_i32_0 = arith.constant 0 : i32
    return %arg0, %c0_i32 : i32, i32
  }
  func.func @transform_1(%arg0: i32) -> (i32, i32) {
    %c0_i32 = arith.constant 0 : i32
    %c0_i32_0 = arith.constant 0 : i32
    return %arg0, %c0_i32 : i32, i32
  }
  func.func @transform_2(%arg0: i32) -> (i32, i32) {
    %c0_i32 = arith.constant 0 : i32
    %c0_i32_0 = arith.constant 0 : i32
    return %arg0, %c0_i32 : i32, i32
  }
  func.func @transform_3(%arg0: i32) -> (i32, i32, i32) {
    %c0_i32 = arith.constant 0 : i32
    %c0_i32_0 = arith.constant 0 : i32
    %c0_i32_1 = arith.constant 0 : i32
    return %arg0, %c0_i32, %c0_i32_0 : i32, i32, i32
  }
}

</mosaic_0001>

<llo_original>
// kernel: gaussian_loss_pallas.1
$region0: #{gaussian_loss_pallas.1}
  #allocation0 [shape = 'u32[]', space=smem, size = 0x4, offset = 0x4, fixed_abs, tag = 'smem constant byte address 0x4 - core index']
  #allocation1 [shape = 'u32[72,128]{1,0:T(1,128)}', space=vmem, size = 0x9000, scoped, tag = 'internal scratch']
  %s0 = inlined_call_operand.vmem [shape: f32[16,128], index: 0, kind: input, shape index: {}]
  %s1 = inlined_call_operand.vmem [shape: f32[16,128], index: 1, kind: input, shape index: {}]
  %s2 = inlined_call_operand.vmem [shape: f32[16,128], index: 2, kind: input, shape index: {}]
  %s3 = inlined_call_operand.vmem [shape: f32[1,8,128], index: 3, kind: output, shape index: {}]
  %s4 = sld [smem:[#allocation0]]
  $region22: #{gaussian_loss_pallas.1} parent=0
    _
  %s6 = ssub.s32 1, %s4
  %s7 = scalar_select 0, %s6, %s4
  // Predicated region
  $region2: #{gaussian_loss_pallas.1} parent=0 // pred_check
    _
  $region3: #{gaussian_loss_pallas.1} parent=0 // pred_check_branch
    %9 = sbr.rel (0) target = $region5
  $region4: #{gaussian_loss_pallas.1} parent=0 // pred_region
    _
  $region5: #{gaussian_loss_pallas.1} parent=0 // pred_fallthru
    _
  // Predicated region
  $region6: #{gaussian_loss_pallas.1} parent=0 // pred_check
    _
  $region7: #{gaussian_loss_pallas.1} parent=0 // pred_check_branch
    %11 = sbr.rel (0) target = $region9
  $region8: #{gaussian_loss_pallas.1} parent=0 // pred_region
    _
  $region9: #{gaussian_loss_pallas.1} parent=0 // pred_fallthru
    _
  // Predicated region
  $region10: #{gaussian_loss_pallas.1} parent=0 // pred_check
    _
  $region11: #{gaussian_loss_pallas.1} parent=0 // pred_check_branch
    %13 = sbr.rel (0) target = $region13
  $region12: #{gaussian_loss_pallas.1} parent=0 // pred_region
    _
  $region13: #{gaussian_loss_pallas.1} parent=0 // pred_fallthru
    _
  %v14 = vld [vmem:[%s0] sm:$0xff]
  %v15 = vld [vmem:[%s0 + $0x8] sm:$0xff]
  %v16 = vld [vmem:[%s1] sm:$0xff]
  %v17 = vld [vmem:[%s1 + $0x8] sm:$0xff]
  %v18 = vld [vmem:[%s2] sm:$0xff]
  %v19 = vld [vmem:[%s2 + $0x8] sm:$0xff]
  %v20 = vsub.f32 %v14, %v16
  %v21 = vsub.f32 %v15, %v17
  %v22 = vmul.f32 %v20, 2.0
  %v23 = vmul.f32 %v21, 2.0
  %v24 = vsub.f32 0.0, %v18
  %v25 = vsub.f32 0.0, %v19
  %v26 = vmul.f32 %v24, 1.442695
  %v27 = vpow.pop %v26
  %v28 = vmul.f32 %v25, 1.442695
  %v29 = vpow.pop %v28
  %v30 = vmul.f32 %v22, %v27
  %v31 = vmul.f32 %v23, %v29
  %v32 = vmul.f32 %v30, 0.5
  %v33 = vmul.f32 %v31, 0.5
  %v34 = vmul.f32 %v32, %v30
  %v35 = vmul.f32 %v33, %v31
  %v36 = vadd.f32 %v34, %v18
  %v37 = vadd.f32 %v35, %v19
  %v38 = vadd.f32 %v36, 0.9189385
  %v39 = vadd.f32 %v37, 0.9189385
  %v40 = vadd.f32 %v38, %v39
  %41 = vst [vmem:[%s3] sm:$0xff] %v40
  // Predicated region
  $region14: #{gaussian_loss_pallas.1} parent=0 // pred_check
    _
  $region15: #{gaussian_loss_pallas.1} parent=0 // pred_check_branch
    %43 = sbr.rel (0) target = $region17
  $region16: #{gaussian_loss_pallas.1} parent=0 // pred_region
    _
  $region17: #{gaussian_loss_pallas.1} parent=0 // pred_fallthru
    _
  // Predicated region
  $region18: #{gaussian_loss_pallas.1} parent=0 // pred_check
    _
  $region19: #{gaussian_loss_pallas.1} parent=0 // pred_check_branch
    %45 = sbr.rel (0) target = $region21
  $region20: #{gaussian_loss_pallas.1} parent=0 // pred_region
    _
  $region21: #{gaussian_loss_pallas.1} parent=0 // pred_fallthru
    _

</llo_original>
